<compile_context>
chip_gen: v7x
topology: tpu7x:2x2x1
jax: 0.10.0
libtpu: 0.0.40
codegen_flags: <defaults>
</compile_context>

<pallas_src>
import functools

import jax
import jax.numpy as jnp
from jax.experimental import pallas as pl
from jax.experimental.pallas import tpu as pltpu

BETA = 0.99999
EPSILON = 1e-05


def _round_up(x, m):
    return (x + m - 1) // m * m


def _vmem_plan():
    """(working-set budget, vmem_limit_bytes) chosen per chip generation."""
    phys = 64 * 1024 * 1024  # conservative default: assume v7x-class (64 MiB physical)
    try:
        info = pltpu.get_tpu_info()
        phys = int(getattr(info, "vmem_capacity_bytes", phys)) or phys
    except Exception:
        pass
    if phys <= 64 * 1024 * 1024:               # v7x: keep double-buffers well under 64 MiB
        return 24 * 1024 * 1024, 48 * 1024 * 1024
    return 48 * 1024 * 1024, 64 * 1024 * 1024  # v5e / v6e: 128 MiB physical VMEM


def _feature_tile_candidates(f_pad):
    cands = [t for t in (2048, 1024, 512, 256, 128) if t <= f_pad and f_pad % t == 0]
    if f_pad >= 256:
        # keep >= 2 feature tiles so the single "parallel" axis can split across
        # v7x's two TensorCores (cheap: the kernel is DMA-bound either way).
        multi = [t for t in cands if f_pad // t >= 2]
        if multi:
            cands = multi
    return cands or [128]


def _plan_tiles(batch, f_pad, in_itemsize, out_itemsize, budget, force_tile_b=None):
    """Pick ('fused', tile_f, None) or ('two_pass', tile_f, tile_b) under the VMEM budget."""
    tiles = _feature_tile_candidates(f_pad)
    if force_tile_b is None:
        for tf in tiles:
            # double-buffered x + out tiles plus the small (2, tf) / (1, tf) stat rows
            need = 2 * batch * tf * (in_itemsize + out_itemsize) + 32 * tf * 4
            if need <= budget:
                return "fused", tf, None
    # Large batch (or forced for testing): B-tiled two-stage path so VMEM use is
    # independent of B and double-buffering is preserved on every generation.
    tf = next((t for t in tiles if t <= 512), tiles[-1])
    if force_tile_b is not None:
        return "two_pass", tf, int(force_tile_b)
    per_row = 2 * tf * (in_itemsize + out_itemsize)
    tb = (budget - 64 * tf * 4) // per_row
    tb = max(8, min(_round_up(batch, 8), (tb // 8) * 8))
    return "two_pass", tf, tb


# ---------------------------------------------------------------------------
# Kernels
# ---------------------------------------------------------------------------

def _popart_fused_kernel(inv_deb_ref, x_ref, stats_ref, out_ref, new_stats_ref,
                         *, beta, batch_size):
    """Single pass over x: full-B feature tile. stats layout: row 0 = mean, row 1 = mean_sq."""
    x = x_ref[...].astype(jnp.float32)                           # (B, TILE_F)

    inv_b = jnp.float32(1.0 / batch_size)
    batch_mean = jnp.sum(x, axis=0, keepdims=True) * inv_b        # (1, TILE_F)
    batch_sq_mean = jnp.sum(x * x, axis=0, keepdims=True) * inv_b

    w = jnp.float32(beta)
    omw = jnp.float32(1.0 - beta)
    stats = stats_ref[...]                                        # (2, TILE_F)
    new_rm = stats[0:1, :] * w + batch_mean * omw
    new_rmsq = stats[1:2, :] * w + batch_sq_mean * omw

    inv_deb = inv_deb_ref[0]                                      # scalar from SMEM
    mean = new_rm * inv_deb
    mean_sq = new_rmsq * inv_deb
    var = jnp.maximum(mean_sq - mean * mean, jnp.float32(0.01))
    inv_std = jax.lax.rsqrt(var)

    out_ref[...] = ((x - mean) * inv_std).astype(out_ref.dtype)
    new_stats_ref[...] = jnp.concatenate([new_rm, new_rmsq], axis=0)


def _popart_stats_kernel(inv_deb_ref, x_ref, stats_ref,
                         new_stats_ref, mean_ref, inv_std_ref,
                         sum_acc, sq_acc, *, beta, batch_size, tile_b):
    """Stage 1 of the large-B path: accumulate sums over the 'arbitrary' B axis."""
    b = pl.program_id(1)

    @pl.when(b == 0)
    def _init():
        sum_acc[...] = jnp.zeros_like(sum_acc)
        sq_acc[...] = jnp.zeros_like(sq_acc)

    x = x_ref[...].astype(jnp.float32)                            # (TILE_B, TILE_F)
    # Mask rows past the true batch size (ragged last B block reads are undefined).
    row = jax.lax.broadcasted_iota(jnp.int32, x.shape, 0) + b * tile_b
    x = jnp.where(row < batch_size, x, jnp.float32(0.0))
    sum_acc[...] += jnp.sum(x, axis=0, keepdims=True)
    sq_acc[...] += jnp.sum(x * x, axis=0, keepdims=True)

    @pl.when(b == pl.num_programs(1) - 1)
    def _finalize():
        inv_b = jnp.float32(1.0 / batch_size)
        w = jnp.float32(beta)
        omw = jnp.float32(1.0 - beta)
        stats = stats_ref[...]
        new_rm = stats[0:1, :] * w + sum_acc[...] * inv_b * omw
        new_rmsq = stats[1:2, :] * w + sq_acc[...] * inv_b * omw
        inv_deb = inv_deb_ref[0]
        mean = new_rm * inv_deb
        mean_sq = new_rmsq * inv_deb
        var = jnp.maximum(mean_sq - mean * mean, jnp.float32(0.01))
        new_stats_ref[...] = jnp.concatenate([new_rm, new_rmsq], axis=0)
        mean_ref[...] = mean
        inv_std_ref[...] = jax.lax.rsqrt(var)


def _popart_norm_kernel(x_ref, mean_ref, inv_std_ref, out_ref):
    """Stage 2 of the large-B path: normalize one (TILE_B, TILE_F) tile."""
    x = x_ref[...].astype(jnp.float32)
    out_ref[...] = ((x - mean_ref[...]) * inv_std_ref[...]).astype(out_ref.dtype)


# ---------------------------------------------------------------------------
# Wrapper
# ---------------------------------------------------------------------------

def popart_forward(x, running_mean, running_mean_sq, debiasing_term,
                   *, beta=BETA, epsilon=EPSILON, _force_tile_b=None):
    """x: (B, F). running_mean / running_mean_sq: (F,) f32. debiasing_term: scalar f32.

    Returns (out, new_running_mean, new_running_mean_sq, new_debiasing_term).
    out dtype follows x.dtype (floating) to halve output HBM traffic for bf16 inputs."""
    B, F = x.shape
    out_dtype = x.dtype if jnp.issubdtype(x.dtype, jnp.floating) else jnp.float32
    in_itemsize = jnp.dtype(x.dtype).itemsize
    out_itemsize = jnp.dtype(out_dtype).itemsize

    budget, vmem_limit = _vmem_plan()
    f_pad = max(_round_up(F, 128), 128)
    mode, tile_f, tile_b = _plan_tiles(B, f_pad, in_itemsize, out_itemsize, budget,
                                       force_tile_b=_force_tile_b)
    num_f = f_pad // tile_f

    stats = jnp.stack([jnp.asarray(running_mean, jnp.float32),
                       jnp.asarray(running_mean_sq, jnp.float32)], axis=0)   # (2, F)
    pad = f_pad - F
    if pad:
        # TODO(synk): handle the <=127-lane ragged tail with an in-kernel masked store
        # instead of this extra wrapper-side pass over x.
        x_in = jnp.pad(x, ((0, 0), (0, pad)))
        stats = jnp.pad(stats, ((0, 0), (0, pad)))
    else:
        x_in = x

    # Scalar debiasing-term update is pure scalar math -> wrapper; the kernels only need
    # 1 / clamp(new_db, eps), passed as an SMEM scalar (replaces two divides with muls).
    w = jnp.float32(beta)
    new_db = jnp.asarray(debiasing_term, jnp.float32) * w + jnp.float32(1.0 - beta)
    inv_deb = jnp.float32(1.0) / jnp.maximum(new_db, jnp.float32(epsilon))
    inv_deb_arr = inv_deb.reshape(1)

    smem_spec = pl.BlockSpec(memory_space=pltpu.MemorySpace.SMEM)

    if mode == "fused":
        kernel = functools.partial(_popart_fused_kernel, beta=beta, batch_size=B)
        xo_spec = pl.BlockSpec((B, tile_f), lambda j: (0, j))
        st_spec = pl.BlockSpec((2, tile_f), lambda j: (0, j))
        out, new_stats = pl.pallas_call(
            kernel,
            grid=(num_f,),
            in_specs=[smem_spec, xo_spec, st_spec],
            out_specs=(xo_spec, st_spec),
            out_shape=(jax.ShapeDtypeStruct((B, f_pad), out_dtype),
                       jax.ShapeDtypeStruct((2, f_pad), jnp.float32)),
            input_output_aliases={2: 1},
            compiler_params=pltpu.CompilerParams(
                dimension_semantics=("parallel",),
                vmem_limit_bytes=vmem_limit),
        )(inv_deb_arr, x_in, stats)
    else:
        num_b = -(-B // tile_b)
        x_spec = pl.BlockSpec((tile_b, tile_f), lambda j, b: (b, j))
        st_spec = pl.BlockSpec((2, tile_f), lambda j, b: (0, j))
        row_spec = pl.BlockSpec((1, tile_f), lambda j, b: (0, j))

        stats_kernel = functools.partial(_popart_stats_kernel, beta=beta,
                                         batch_size=B, tile_b=tile_b)
        new_stats, mean_row, inv_std_row = pl.pallas_call(
            stats_kernel,
            grid=(num_f, num_b),
            in_specs=[smem_spec, x_spec, st_spec],
            out_specs=(st_spec, row_spec, row_spec),
            out_shape=(jax.ShapeDtypeStruct((2, f_pad), jnp.float32),
                       jax.ShapeDtypeStruct((1, f_pad), jnp.float32),
                       jax.ShapeDtypeStruct((1, f_pad), jnp.float32)),
            scratch_shapes=[pltpu.VMEM((1, tile_f), jnp.float32),
                            pltpu.VMEM((1, tile_f), jnp.float32)],
            input_output_aliases={2: 0},
            compiler_params=pltpu.CompilerParams(
                dimension_semantics=("parallel", "arbitrary"),
                vmem_limit_bytes=vmem_limit),
        )(inv_deb_arr, x_in, stats)

        out = pl.pallas_call(
            _popart_norm_kernel,
            grid=(num_f, num_b),
            in_specs=[x_spec, row_spec, row_spec],
            out_specs=x_spec,
            out_shape=jax.ShapeDtypeStruct((B, f_pad), out_dtype),
            compiler_params=pltpu.CompilerParams(
                dimension_semantics=("parallel", "parallel"),
                vmem_limit_bytes=vmem_limit),
        )(x_in, mean_row, inv_std_row)

    return out[:, :F], new_stats[0, :F], new_stats[1, :F], new_db


def popart_forward_ref(x, running_mean, running_mean_sq, debiasing_term,
                       *, beta=BETA, epsilon=EPSILON):
    """Pure-JAX reference mirroring the PyTorch module (train mode)."""
    x = x.astype(jnp.float32)
    batch_mean = jnp.mean(x, axis=0)
    batch_sq_mean = jnp.mean(x * x, axis=0)
    w = beta
    new_rm = running_mean * w + batch_mean * (1.0 - w)
    new_rmsq = running_mean_sq * w + batch_sq_mean * (1.0 - w)
    new_db = debiasing_term * w + (1.0 - w)
    deb = jnp.maximum(new_db, epsilon)
    mean = new_rm / deb
    msq = new_rmsq / deb
    var = jnp.maximum(msq - mean ** 2, 0.01)
    out = (x - mean[None, :]) / jnp.sqrt(var)[None, :]
    return out, new_rm, new_rmsq, new_db


if __name__ == "__main__":
    key = jax.random.PRNGKey(0)
    k0, k1 = jax.random.split(key)

    # Case 1: fused path, f32, F not a multiple of 128 (exercises the 128-lane pad).
    B, F = 64, 96
    x = jax.random.normal(k0, (B, F), dtype=jnp.float32) * 3.0 + 1.5
    rm = jnp.zeros((F,), jnp.float32)
    rmsq = jnp.zeros((F,), jnp.float32)
    db = jnp.float32(0.0)

    out, nrm, nrmsq, ndb = popart_forward(x, rm, rmsq, db)
    jax.block_until_ready(out)
    r_out, r_rm, r_rmsq, r_db = popart_forward_ref(x, rm, rmsq, db)
    assert jnp.allclose(out, r_out, atol=1e-5, rtol=1e-5)
    assert jnp.allclose(nrm, r_rm, atol=1e-6, rtol=1e-5)
    assert jnp.allclose(nrmsq, r_rmsq, atol=1e-6, rtol=1e-5)
    assert jnp.allclose(ndb, r_db, atol=1e-7, rtol=1e-7)

    # Case 2: bf16 input -> bf16 output (traffic-halving path), F multiple of 128.
    B2, F2 = 64, 256
    x2 = (jax.random.normal(k1, (B2, F2), jnp.float32) * 2.0 - 0.5).astype(jnp.bfloat16)
    rm2 = jnp.zeros((F2,), jnp.float32)
    rmsq2 = jnp.zeros((F2,), jnp.float32)
    out2, nrm2, nrmsq2, ndb2 = popart_forward(x2, rm2, rmsq2, jnp.float32(0.0))
    jax.block_until_ready(out2)
    assert out2.dtype == jnp.bfloat16
    r2_out, r2_rm, r2_rmsq, r2_db = popart_forward_ref(x2, rm2, rmsq2, jnp.float32(0.0))
    assert jnp.allclose(out2.astype(jnp.float32), r2_out, atol=5e-2, rtol=2e-2)
    assert jnp.allclose(nrm2, r2_rm, atol=1e-6, rtol=1e-5)
    assert jnp.allclose(nrmsq2, r2_rmsq, atol=1e-6, rtol=1e-5)

    # Case 3: forced large-B two-stage path (B tiled by 16) on the same data as case 1.
    out3, nrm3, nrmsq3, ndb3 = popart_forward(x, rm, rmsq, db, _force_tile_b=16)
    jax.block_until_ready(out3)
    assert jnp.allclose(out3, r_out, atol=1e-5, rtol=1e-5)
    assert jnp.allclose(nrm3, r_rm, atol=1e-6, rtol=1e-5)
    assert jnp.allclose(nrmsq3, r_rmsq, atol=1e-6, rtol=1e-5)
    assert jnp.allclose(ndb3, r_db, atol=1e-7, rtol=1e-7)

    print("KERNEL_OK")
</pallas_src>

<mosaic_0001>
module attributes {stable_mosaic.version = 11 : i64} {
  func.func @_popart_fused_kernel(%arg0: i32, %arg1: memref<1xf32, #tpu.memory_space<smem>>, %arg2: memref<64x128xf32, #tpu.memory_space<vmem>>, %arg3: memref<2x128xf32, #tpu.memory_space<vmem>>, %arg4: memref<64x128xf32, #tpu.memory_space<vmem>>, %arg5: memref<2x128xf32, #tpu.memory_space<vmem>>) attributes {dimension_semantics = [#tpu.dimension_semantics<parallel>], iteration_bounds = array<i64: 1>, scalar_prefetch = 0 : i64, scratch_operands = 0 : i64, tpu.core_type = #tpu.core_type<tc>, window_params = [{transform_indices = @transform_0, window_bounds = array<i64: 1>}, {transform_indices = @transform_1, window_bounds = array<i64: 64, 128>}, {transform_indices = @transform_2, window_bounds = array<i64: 2, 128>}, {transform_indices = @transform_3, window_bounds = array<i64: 64, 128>}, {transform_indices = @transform_4, window_bounds = array<i64: 2, 128>}]} {
    %c0 = arith.constant 0 : index
    %c0_0 = arith.constant 0 : index
    %0 = vector.load %arg2[%c0, %c0_0] : memref<64x128xf32, #tpu.memory_space<vmem>>, vector<64x128xf32>
    %cst = arith.constant dense<0.000000e+00> : vector<128xf32>
    %1 = vector.multi_reduction <add>, %0, %cst [0] : vector<64x128xf32> to vector<128xf32>
    %2 = vector.shape_cast %1 : vector<128xf32> to vector<1x128xf32>
    %cst_1 = arith.constant 1.562500e-02 : f32
    %3 = vector.broadcast %cst_1 : f32 to vector<1x128xf32>
    %4 = arith.mulf %2, %3 : vector<1x128xf32>
    %5 = arith.mulf %0, %0 : vector<64x128xf32>
    %cst_2 = arith.constant dense<0.000000e+00> : vector<128xf32>
    %6 = vector.multi_reduction <add>, %5, %cst_2 [0] : vector<64x128xf32> to vector<128xf32>
    %7 = vector.shape_cast %6 : vector<128xf32> to vector<1x128xf32>
    %cst_3 = arith.constant 1.562500e-02 : f32
    %8 = vector.broadcast %cst_3 : f32 to vector<1x128xf32>
    %9 = arith.mulf %7, %8 : vector<1x128xf32>
    %c0_4 = arith.constant 0 : index
    %c0_5 = arith.constant 0 : index
    %10 = vector.load %arg3[%c0_4, %c0_5] : memref<2x128xf32, #tpu.memory_space<vmem>>, vector<2x128xf32>
    %11 = vector.extract_strided_slice %10 {offsets = [0, 0], sizes = [1, 128], strides = [1, 1]} : vector<2x128xf32> to vector<1x128xf32>
    %cst_6 = arith.constant 0.999989986 : f32
    %12 = vector.broadcast %cst_6 : f32 to vector<1x128xf32>
    %13 = arith.mulf %11, %12 : vector<1x128xf32>
    %cst_7 = arith.constant 9.99999974E-6 : f32
    %14 = vector.broadcast %cst_7 : f32 to vector<1x128xf32>
    %15 = arith.mulf %4, %14 : vector<1x128xf32>
    %16 = arith.addf %13, %15 : vector<1x128xf32>
    %17 = vector.extract_strided_slice %10 {offsets = [1, 0], sizes = [1, 128], strides = [1, 1]} : vector<2x128xf32> to vector<1x128xf32>
    %cst_8 = arith.constant 0.999989986 : f32
    %18 = vector.broadcast %cst_8 : f32 to vector<1x128xf32>
    %19 = arith.mulf %17, %18 : vector<1x128xf32>
    %cst_9 = arith.constant 9.99999974E-6 : f32
    %20 = vector.broadcast %cst_9 : f32 to vector<1x128xf32>
    %21 = arith.mulf %9, %20 : vector<1x128xf32>
    %22 = arith.addf %19, %21 : vector<1x128xf32>
    %c0_10 = arith.constant 0 : index
    %23 = memref.load %arg1[%c0_10] : memref<1xf32, #tpu.memory_space<smem>>
    %24 = vector.broadcast %23 : f32 to vector<1x128xf32>
    %25 = arith.mulf %16, %24 : vector<1x128xf32>
    %26 = vector.broadcast %23 : f32 to vector<1x128xf32>
    %27 = arith.mulf %22, %26 : vector<1x128xf32>
    %28 = arith.mulf %25, %25 : vector<1x128xf32>
    %29 = arith.subf %27, %28 : vector<1x128xf32>
    %cst_11 = arith.constant 0.00999999977 : f32
    %30 = vector.broadcast %cst_11 : f32 to vector<1x128xf32>
    %31 = arith.maximumf %29, %30 : vector<1x128xf32>
    %32 = math.rsqrt %31 : vector<1x128xf32>
    %33 = vector.broadcast %25 : vector<1x128xf32> to vector<64x128xf32>
    %34 = arith.subf %0, %33 : vector<64x128xf32>
    %35 = vector.broadcast %32 : vector<1x128xf32> to vector<64x128xf32>
    %36 = arith.mulf %34, %35 : vector<64x128xf32>
    %c0_12 = arith.constant 0 : index
    %c0_13 = arith.constant 0 : index
    %37 = vector.load %arg4[%c0_12, %c0_13] : memref<64x128xf32, #tpu.memory_space<vmem>>, vector<64x128xf32>
    tpu.vector_store %arg4[%c0_12, %c0_13], %36 {strides = array<i32>} : memref<64x128xf32, #tpu.memory_space<vmem>>, vector<64x128xf32>,
    %38 = tpu.concatenate %16, %22 in 0 : vector<1x128xf32>, vector<1x128xf32> -> vector<2x128xf32>
    %c0_14 = arith.constant 0 : index
    %c0_15 = arith.constant 0 : index
    %39 = vector.load %arg5[%c0_14, %c0_15] : memref<2x128xf32, #tpu.memory_space<vmem>>, vector<2x128xf32>
    tpu.vector_store %arg5[%c0_14, %c0_15], %38 {strides = array<i32>} : memref<2x128xf32, #tpu.memory_space<vmem>>, vector<2x128xf32>,
    return
  }
  func.func @transform_0(%arg0: i32) -> i32 {
    %c0_i32 = arith.constant 0 : i32
    %c0_i32_0 = arith.constant 0 : i32
    return %c0_i32 : i32
  }
  func.func @transform_1(%arg0: i32) -> (i32, i32) {
    %c0_i32 = arith.constant 0 : i32
    %c0_i32_0 = arith.constant 0 : i32
    return %c0_i32, %arg0 : i32, i32
  }
  func.func @transform_2(%arg0: i32) -> (i32, i32) {
    %c0_i32 = arith.constant 0 : i32
    %c0_i32_0 = arith.constant 0 : i32
    return %c0_i32, %arg0 : i32, i32
  }
  func.func @transform_3(%arg0: i32) -> (i32, i32) {
    %c0_i32 = arith.constant 0 : i32
    %c0_i32_0 = arith.constant 0 : i32
    return %c0_i32, %arg0 : i32, i32
  }
  func.func @transform_4(%arg0: i32) -> (i32, i32) {
    %c0_i32 = arith.constant 0 : i32
    %c0_i32_0 = arith.constant 0 : i32
    return %c0_i32, %arg0 : i32, i32
  }
}

</mosaic_0001>

<llo_original>
// kernel: tpu_custom_call.1
$region0: #{tpu_custom_call.1}
  #allocation0 [shape = 'u32[]', space=smem, size = 0x4, offset = 0x4, fixed_abs, tag = 'smem constant byte address 0x4 - core index']
  #allocation1 [shape = 'u32[144,128]{1,0:T(1,128)}', space=vmem, size = 0x12000, scoped, tag = 'internal scratch']
  #allocation2 [shape = 'f32[1]{0:T(128)S(6)}', space=smem, size = 0x200, scoped, tag = 'scoped memory for tpu_custom_call.1']
  %s0 = inlined_call_operand.<no memory space> [shape: f32[1], index: 0, kind: input, shape index: {}]
  %s1 = inlined_call_operand.hbm [shape: f32[64,128], index: 1, kind: input, shape index: {}]
  %s2 = inlined_call_operand.hbm [shape: f32[2,128], index: 2, kind: input, shape index: {}, may-alias: {2,4}]
  %s3 = inlined_call_operand.hbm [shape: f32[64,128], index: 3, kind: output, shape index: {0}]
  %s4 = inlined_call_operand.hbm [shape: f32[2,128], index: 4, kind: output, shape index: {1}, may-alias: {2,4}]
  %5 = xla_tuple %s3, %s4
  %s6 = sld [smem:[#allocation0]]
  $region38: #{tpu_custom_call.1} parent=0
    _
  %s8 = ssub.s32 1, %s6
  %s9 = scalar_select 0, %s8, %s6
  %10 = sst [smem:[#allocation2]] %s0
  $region1: #{tpu_custom_call.1} parent=0
    #allocation3 [shape = 'u8[32768]{0}', space=vmem, size = 0x8000, scoped, tag = 'input window, operand 1, single buffered']
    #allocation4 [shape = 's32[1]{0}', space=sflag, size = 0x4, scoped, tag = 'scoped memory for tpu_custom_call.1']
    #allocation5 [shape = 's32[1]{0}', space=sflag, size = 0x4, scoped, tag = 'scoped memory for tpu_custom_call.1']
    #allocation6 [shape = 'u8[1024]{0}', space=vmem, size = 0x400, scoped, tag = 'input window, operand 2, single buffered']
    #allocation7 [shape = 's32[1]{0}', space=sflag, size = 0x4, scoped, tag = 'scoped memory for tpu_custom_call.1']
    #allocation8 [shape = 'u8[32768]{0}', space=vmem, size = 0x8000, scoped, tag = 'output window, operand 0, single buffered']
    #allocation9 [shape = 'u8[1024]{0}', space=vmem, size = 0x400, scoped, tag = 'output window, operand 1, single buffered']
    #allocation10 [shape = 's32[1]{0}', space=sflag, size = 0x4, scoped, tag = 'scoped memory for tpu_custom_call.1']
    %11 = vsyncpa [#allocation4], 0
    %12 = vsyncpa [#allocation7], 0
    %13 = vsyncpa [#allocation5], 0
    %14 = vsyncpa [#allocation10], 0
    // Predicated region
    $region2: #{tpu_custom_call.1} parent=1 // pred_check
      _
    $region3: #{tpu_custom_call.1} parent=1 // pred_check_branch
      %16 = sbr.rel (0) target = $region5
    $region4: #{tpu_custom_call.1} parent=1 // pred_region
      _
    $region5: #{tpu_custom_call.1} parent=1 // pred_fallthru
      _
    // Predicated region
    $region6: #{tpu_custom_call.1} parent=1 // pred_check
      _
    $region7: #{tpu_custom_call.1} parent=1 // pred_check_branch
      %18 = sbr.rel (0) target = $region9
    $region8: #{tpu_custom_call.1} parent=1 // pred_region
      %s20 = ssub.s32 1024, 1024
      %21 = vsyncadd [#allocation4], %s20
      %s22 = sshll.u32 [#allocation3], 4
      %s23 = int_to_ptr.vmem [resolvable:$true] %s22
      %28 = dma.hbm_to_vmem [thread:$0]  %s1, 1024, %s23, [#allocation4], 128, 128, 8
    $region9: #{tpu_custom_call.1} parent=1 // pred_fallthru
      _
    // Predicated region
    $region10: #{tpu_custom_call.1} parent=1 // pred_check
      _
    $region11: #{tpu_custom_call.1} parent=1 // pred_check_branch
      %30 = sbr.rel (0) target = $region13
    $region12: #{tpu_custom_call.1} parent=1 // pred_region
      %s32 = ssub.s32 32, 32
      %33 = vsyncadd [#allocation7], %s32
      %s35 = sshll.u32 [#allocation6], 4
      %s36 = int_to_ptr.vmem [resolvable:$true] %s35
      %38 = dma.hbm_to_vmem [thread:$0]  %s2, 32, %s36, [#allocation7]
    $region13: #{tpu_custom_call.1} parent=1 // pred_fallthru
      _
    // Predicated region
    $region14: #{tpu_custom_call.1} parent=1 // pred_check
      _
    $region15: #{tpu_custom_call.1} parent=1 // pred_check_branch
      %40 = sbr.rel (0) target = $region17
    $region16: #{tpu_custom_call.1} parent=1 // pred_region
      %41 = dma.done [#allocation4], 1024
    $region17: #{tpu_custom_call.1} parent=1 // pred_fallthru
      _
    // Predicated region
    $region18: #{tpu_custom_call.1} parent=1 // pred_check
      _
    $region19: #{tpu_custom_call.1} parent=1 // pred_check_branch
      %43 = sbr.rel (0) target = $region21
    $region20: #{tpu_custom_call.1} parent=1 // pred_region
      %44 = dma.done [#allocation7], 32
    $region21: #{tpu_custom_call.1} parent=1 // pred_fallthru
      _
    %v45 = vld [vmem:[#allocation3] sm:$0xff]
    %v46 = vld [vmem:[#allocation3 + $0x8] sm:$0xff]
    %v47 = vld [vmem:[#allocation3 + $0x10] sm:$0xff]
    %v48 = vld [vmem:[#allocation3 + $0x18] sm:$0xff]
    %v49 = vld [vmem:[#allocation3 + $0x20] sm:$0xff]
    %v50 = vld [vmem:[#allocation3 + $0x28] sm:$0xff]
    %v51 = vld [vmem:[#allocation3 + $0x30] sm:$0xff]
    %v52 = vld [vmem:[#allocation3 + $0x38] sm:$0xff]
    %v53 = vadd.f32 %v45, %v46
    %v54 = vadd.f32 %v53, %v47
    %v55 = vadd.f32 %v54, %v48
    %v56 = vadd.f32 %v55, %v49
    %v57 = vadd.f32 %v56, %v50
    %v58 = vadd.f32 %v57, %v51
    %v59 = vadd.f32 %v58, %v52
    %v60 = vrot.slane %v59, 4
    %v61 = vadd.f32 %v59, %v60
    %v62 = vrot.slane %v61, 2
    %v63 = vadd.f32 %v61, %v62
    %v64 = vrot.slane %v63, 1
    %v65 = vadd.f32 %v63, %v64
    %v66 = vmul.f32 %v65, 0.015625
    %v67 = vmul.f32 %v45, %v45
    %v68 = vmul.f32 %v46, %v46
    %v69 = vmul.f32 %v47, %v47
    %v70 = vmul.f32 %v48, %v48
    %v71 = vmul.f32 %v49, %v49
    %v72 = vmul.f32 %v50, %v50
    %v73 = vmul.f32 %v51, %v51
    %v74 = vmul.f32 %v52, %v52
    %v75 = vadd.f32 %v67, %v68
    %v76 = vadd.f32 %v75, %v69
    %v77 = vadd.f32 %v76, %v70
    %v78 = vadd.f32 %v77, %v71
    %v79 = vadd.f32 %v78, %v72
    %v80 = vadd.f32 %v79, %v73
    %v81 = vadd.f32 %v80, %v74
    %v82 = vrot.slane %v81, 4
    %v83 = vadd.f32 %v81, %v82
    %v84 = vrot.slane %v83, 2
    %v85 = vadd.f32 %v83, %v84
    %v86 = vrot.slane %v85, 1
    %v87 = vadd.f32 %v85, %v86
    %v88 = vmul.f32 %v87, 0.015625
    %v89 = vld [vmem:[#allocation6] sm:$0x3]
    %v90 = vmul.f32 %v89, 0.99999
    %v91 = vmul.f32 %v66, 1e-05
    %v92 = vadd.f32 %v90, %v91
    %v93 = vmul.f32 %v88, 1e-05
    %v94 = vadd.f32 %v90, %v93
    %s95 = sld [smem:[#allocation2]]
    %v96 = vstv %s95
    %v97 = vmul.f32 %v92, %v96
    %v98 = vmul.f32 %v94, %v96
    %v99 = vmul.f32 %v97, %v97
    %v101 = vrot.slane %v99, 7
    %v103 = vsub.f32 %v98, %v101
    %v104 = vmax.f32 %v103, 0.01
    %v105 = vrsqrt.pop %v104
    %v106 = vlaneseq
    %v107 = vshrl.u32 %v106, 7
    %v108 = vsub.s32 0, %v107
    %v109 = vrot.slane %v97, %v108
    %v110 = vsub.f32 %v45, %v109
    %v111 = vsub.f32 %v46, %v109
    %v112 = vsub.f32 %v47, %v109
    %v113 = vsub.f32 %v48, %v109
    %v114 = vsub.f32 %v49, %v109
    %v115 = vsub.f32 %v50, %v109
    %v116 = vsub.f32 %v51, %v109
    %v117 = vsub.f32 %v52, %v109
    %v118 = vlaneseq
    %v119 = vshrl.u32 %v118, 7
    %v120 = vsub.s32 1, %v119
    %v121 = vrot.slane %v105, %v120
    %v122 = vmul.f32 %v110, %v121
    %v123 = vmul.f32 %v111, %v121
    %v124 = vmul.f32 %v112, %v121
    %v125 = vmul.f32 %v113, %v121
    %v126 = vmul.f32 %v114, %v121
    %v127 = vmul.f32 %v115, %v121
    %v128 = vmul.f32 %v116, %v121
    %v129 = vmul.f32 %v117, %v121
    %130 = vst [vmem:[#allocation8] sm:$0xff] %v122
    %131 = vst [vmem:[#allocation8 + $0x8] sm:$0xff] %v123
    %132 = vst [vmem:[#allocation8 + $0x10] sm:$0xff] %v124
    %133 = vst [vmem:[#allocation8 + $0x18] sm:$0xff] %v125
    %134 = vst [vmem:[#allocation8 + $0x20] sm:$0xff] %v126
    %135 = vst [vmem:[#allocation8 + $0x28] sm:$0xff] %v127
    %136 = vst [vmem:[#allocation8 + $0x30] sm:$0xff] %v128
    %137 = vst [vmem:[#allocation8 + $0x38] sm:$0xff] %v129
    %vm138 = vcmask 1040384
    %v139 = vsel %vm138, %v92, %v94
    %140 = vst [vmem:[#allocation9] sm:$0x3] %v139
    // Predicated region
    $region22: #{tpu_custom_call.1} parent=1 // pred_check
      _
    $region23: #{tpu_custom_call.1} parent=1 // pred_check_branch
      %142 = sbr.rel (0) target = $region25
    $region24: #{tpu_custom_call.1} parent=1 // pred_region
      %s144 = ssub.s32 1024, 1024
      %145 = vsyncadd [#allocation5], %s144
      %s146 = sshll.u32 [#allocation8], 4
      %s147 = int_to_ptr.vmem [resolvable:$true] %s146
      %152 = dma.vmem_to_hbm [thread:$0]  %s147, 1024, %s3, [#allocation5], 128, 128, 8
    $region25: #{tpu_custom_call.1} parent=1 // pred_fallthru
      _
    // Predicated region
    $region26: #{tpu_custom_call.1} parent=1 // pred_check
      _
    $region27: #{tpu_custom_call.1} parent=1 // pred_check_branch
      %154 = sbr.rel (0) target = $region29
    $region28: #{tpu_custom_call.1} parent=1 // pred_region
      %s156 = ssub.s32 32, 32
      %157 = vsyncadd [#allocation10], %s156
      %s159 = sshll.u32 [#allocation9], 4
      %s160 = int_to_ptr.vmem [resolvable:$true] %s159
      %162 = dma.vmem_to_hbm [thread:$0]  %s160, 32, %s4, [#allocation10]
    $region29: #{tpu_custom_call.1} parent=1 // pred_fallthru
      _
    // Predicated region
    $region30: #{tpu_custom_call.1} parent=1 // pred_check
      _
    $region31: #{tpu_custom_call.1} parent=1 // pred_check_branch
      %164 = sbr.rel (0) target = $region33
    $region32: #{tpu_custom_call.1} parent=1 // pred_region
      %165 = dma.done [#allocation5], 1024
    $region33: #{tpu_custom_call.1} parent=1 // pred_fallthru
      _
    // Predicated region
    $region34: #{tpu_custom_call.1} parent=1 // pred_check
      _
    $region35: #{tpu_custom_call.1} parent=1 // pred_check_branch
      %167 = sbr.rel (0) target = $region37
    $region36: #{tpu_custom_call.1} parent=1 // pred_region
      %168 = dma.done [#allocation10], 32
    $region37: #{tpu_custom_call.1} parent=1 // pred_fallthru
      _
    %169 = vsyncpa [#allocation4], 1
    %170 = vsyncpa [#allocation7], 1
    %171 = vsyncpa [#allocation5], 1
    %172 = vsyncpa [#allocation10], 1

</llo_original>
